<compile_context>
chip_gen: v7x
topology: tpu7x:2x2x1
jax: 0.10.0
libtpu: 0.0.40
codegen_flags: <defaults>
</compile_context>

<pallas_src>
import functools

import jax
import jax.numpy as jnp
from jax.experimental import pallas as pl
from jax.experimental.pallas import tpu as pltpu


def vae_forward_kernel(
    x_ref, eps_ref,
    w1_ref, b1_ref,          # img_2hid
    wms_ref, bms_ref,        # fused hid_2mu | hid_2sigma
    wd1_ref, bd1_ref,        # z_2hid
    wd2_ref, bd2_ref,        # hid_2img
    xrec_ref, musig_ref,
    *, z_dim,
):
    f32 = jnp.float32
    bf16 = jnp.bfloat16

    # encode: h = relu(x @ W1 + b1)   (bf16 operands, f32 accumulation / elementwise)
    x = x_ref[...].astype(bf16)                       # cast in-kernel; no wrapper pass
    h = jnp.dot(x, w1_ref[...], preferred_element_type=f32) + b1_ref[...]
    h = jnp.maximum(h, 0.0)

    # fused mu/sigma projection: one MXU push instead of two
    musig = (jnp.dot(h.astype(bf16), wms_ref[...], preferred_element_type=f32)
             + bms_ref[...])                          # [TB, 2*Z]
    mu = musig[:, :z_dim]
    sigma = musig[:, z_dim:]

    # reparameterize: z = mu + sigma * eps  (f32 VPU)
    z = mu + sigma * eps_ref[...]

    # decode: x_rec = sigmoid(relu(z @ Wd1 + bd1) @ Wd2 + bd2)
    hd = jnp.dot(z.astype(bf16), wd1_ref[...], preferred_element_type=f32) + bd1_ref[...]
    hd = jnp.maximum(hd, 0.0)
    logits = (jnp.dot(hd.astype(bf16), wd2_ref[...], preferred_element_type=f32)
              + bd2_ref[...])

    xrec_ref[...] = jax.nn.sigmoid(logits)
    musig_ref[...] = musig


def _round_up(n, m):
    return ((n + m - 1) // m) * m


def _choose_batch_tile(B, batch_tile):
    """Pick the batch tile TB (multiple of 16) and the padded batch Bp."""
    Bmin = _round_up(B, 16)                     # bf16 packs 16 sublanes / vreg
    TB = _round_up(min(batch_tile, Bmin), 16)
    # Keep >=2 grid steps when the batch allows it so v7x's 2 TCs both get work.
    if Bmin >= 32 and Bmin // TB < 2:
        TB = _round_up((Bmin + 1) // 2, 16)
    Bp = _round_up(Bmin, TB)
    return TB, Bp


def prepare_params(params):
    """One-time weight prep (hoisted out of the per-call hot path):
    fuse mu/sigma projections and cast matmul operands to bf16, biases to f32."""
    bf16, f32 = jnp.bfloat16, jnp.float32
    return dict(
        w1=params["w1"].astype(bf16),
        b1=params["b1"].astype(f32).reshape(1, -1),
        w_musig=jnp.concatenate([params["w_mu"], params["w_sig"]], axis=1).astype(bf16),
        b_musig=jnp.concatenate([params["b_mu"], params["b_sig"]], axis=1)
                   .astype(f32).reshape(1, -1),
        w_d1=params["w_d1"].astype(bf16),
        b_d1=params["b_d1"].astype(f32).reshape(1, -1),
        w_d2=params["w_d2"].astype(bf16),
        b_d2=params["b_d2"].astype(f32).reshape(1, -1),
    )


def vae_forward(x, eps, prepped, *, batch_tile=1024):
    """Runs the VAE forward pass; returns (x_reconstructed, mu, sigma) in f32.

    `prepped` must come from prepare_params() (done once, outside the hot path).
    """
    f32 = jnp.float32
    B, D = x.shape
    Z = eps.shape[1]
    H = prepped["w1"].shape[1]

    TB, Bp = _choose_batch_tile(B, batch_tile)

    x = x.astype(f32)
    eps = eps.astype(f32)
    if Bp != B:
        # Only the batch axis is padded (rows are independent, sliced off at the end).
        x = jnp.pad(x, ((0, Bp - B), (0, 0)))
        eps = jnp.pad(eps, ((0, Bp - B), (0, 0)))

    grid = (Bp // TB,)
    batch_map = lambda i: (i, 0)   # activation tiles walk the batch
    bcast_map = lambda i: (0, 0)   # weights: same block every step -> VMEM-resident

    in_specs = [
        pl.BlockSpec((TB, D), batch_map),        # x      (f32, unpadded lanes)
        pl.BlockSpec((TB, Z), batch_map),        # eps    (f32, unpadded lanes)
        pl.BlockSpec((D, H), bcast_map),         # w1
        pl.BlockSpec((1, H), bcast_map),         # b1
        pl.BlockSpec((H, 2 * Z), bcast_map),     # w_musig
        pl.BlockSpec((1, 2 * Z), bcast_map),     # b_musig
        pl.BlockSpec((Z, H), bcast_map),         # w_d1
        pl.BlockSpec((1, H), bcast_map),         # b_d1
        pl.BlockSpec((H, D), bcast_map),         # w_d2
        pl.BlockSpec((1, D), bcast_map),         # b_d2
    ]
    out_specs = (
        pl.BlockSpec((TB, D), batch_map),        # x_reconstructed
        pl.BlockSpec((TB, 2 * Z), batch_map),    # fused mu|sigma
    )
    out_shapes = (
        jax.ShapeDtypeStruct((Bp, D), f32),
        jax.ShapeDtypeStruct((Bp, 2 * Z), f32),
    )

    xrec_p, musig_p = pl.pallas_call(
        functools.partial(vae_forward_kernel, z_dim=Z),
        grid=grid,
        out_shape=out_shapes,
        in_specs=in_specs,
        out_specs=out_specs,
        compiler_params=pltpu.CompilerParams(
            dimension_semantics=("parallel",),   # shards batch across v7x's 2 TCs
        ),
    )(
        x, eps,
        prepped["w1"], prepped["b1"],
        prepped["w_musig"], prepped["b_musig"],
        prepped["w_d1"], prepped["b_d1"],
        prepped["w_d2"], prepped["b_d2"],
    )

    # Slice batch padding off and split the fused mu|sigma output.
    return xrec_p[:B], musig_p[:B, :Z], musig_p[:B, Z:]


def vae_reference(x, eps, params):
    """Pure-JAX reference mimicking the kernel numerics (bf16 operands, f32 accum)."""
    f32, bf16 = jnp.float32, jnp.bfloat16
    h = (jnp.dot(x.astype(bf16), params["w1"].astype(bf16),
                 preferred_element_type=f32) + params["b1"])
    h = jnp.maximum(h, 0.0)
    hb = h.astype(bf16)
    mu = (jnp.dot(hb, params["w_mu"].astype(bf16),
                  preferred_element_type=f32) + params["b_mu"])
    sigma = (jnp.dot(hb, params["w_sig"].astype(bf16),
                     preferred_element_type=f32) + params["b_sig"])
    z = mu + sigma * eps
    hd = (jnp.dot(z.astype(bf16), params["w_d1"].astype(bf16),
                  preferred_element_type=f32) + params["b_d1"])
    hd = jnp.maximum(hd, 0.0)
    logits = (jnp.dot(hd.astype(bf16), params["w_d2"].astype(bf16),
                      preferred_element_type=f32) + params["b_d2"])
    return jax.nn.sigmoid(logits), mu, sigma


def init_params(key, input_size, hidden_layer, z_dim):
    """Deterministic synthetic parameter init (PyTorch-style uniform fan-in scale)."""
    def linear(k, fan_in, fan_out):
        kw, kb = jax.random.split(k)
        bound = 1.0 / jnp.sqrt(fan_in)
        w = jax.random.uniform(kw, (fan_in, fan_out), jnp.float32, -bound, bound)
        b = jax.random.uniform(kb, (1, fan_out), jnp.float32, -bound, bound)
        return w, b

    k1, k2, k3, k4, k5 = jax.random.split(key, 5)
    w1, b1 = linear(k1, input_size, hidden_layer)        # img_2hid
    w_mu, b_mu = linear(k2, hidden_layer, z_dim)         # hid_2mu
    w_sig, b_sig = linear(k3, hidden_layer, z_dim)       # hid_2sigma
    w_d1, b_d1 = linear(k4, z_dim, hidden_layer)         # z_2hid
    w_d2, b_d2 = linear(k5, hidden_layer, input_size)    # hid_2img
    return dict(
        w1=w1, b1=b1, w_mu=w_mu, b_mu=b_mu, w_sig=w_sig, b_sig=b_sig,
        w_d1=w_d1, b_d1=b_d1, w_d2=w_d2, b_d2=b_d2,
    )


if __name__ == "__main__":
    # Small shapes consistent with the module: x is [batch, input_size] flat pixels.
    batch = 8
    input_size = 64
    hidden_layer = 200
    z_dim = 20

    key = jax.random.PRNGKey(0)
    k_params, k_x, k_eps = jax.random.split(key, 3)

    params = init_params(k_params, input_size, hidden_layer, z_dim)
    prepped = prepare_params(params)          # one-time weight prep (hoisted)

    x = jax.random.uniform(k_x, (batch, input_size), jnp.float32)
    # torch.randn_like(sigma) — drawn in the wrapper and fed to the kernel.
    eps = jax.random.normal(k_eps, (batch, z_dim), jnp.float32)

    x_rec, mu, sigma = jax.block_until_ready(vae_forward(x, eps, prepped))

    xr_ref, mu_ref, sig_ref = vae_reference(x, eps, params)

    assert x_rec.shape == (batch, input_size)
    assert mu.shape == (batch, z_dim) and sigma.shape == (batch, z_dim)
    assert jnp.allclose(x_rec, xr_ref, atol=1e-3, rtol=1e-3)
    assert jnp.allclose(mu, mu_ref, atol=1e-3, rtol=1e-3)
    assert jnp.allclose(sigma, sig_ref, atol=1e-3, rtol=1e-3)

    # Loose sanity check against the full-f32 reference math as well.
    h32 = jnp.maximum(x @ params["w1"] + params["b1"], 0.0)
    mu32 = h32 @ params["w_mu"] + params["b_mu"]
    assert jnp.allclose(mu, mu32, atol=5e-2)

    # Also exercise a multi-tile grid (>=2 grid steps path) to cover the v7x split logic.
    big_B = 64
    kx2, ke2 = jax.random.split(jax.random.PRNGKey(1))
    x2 = jax.random.uniform(kx2, (big_B, input_size), jnp.float32)
    eps2 = jax.random.normal(ke2, (big_B, z_dim), jnp.float32)
    xr2, mu2, sg2 = jax.block_until_ready(vae_forward(x2, eps2, prepped, batch_tile=1024))
    xr2_r, mu2_r, sg2_r = vae_reference(x2, eps2, params)
    assert jnp.allclose(xr2, xr2_r, atol=1e-3, rtol=1e-3)
    assert jnp.allclose(mu2, mu2_r, atol=1e-3, rtol=1e-3)
    assert jnp.allclose(sg2, sg2_r, atol=1e-3, rtol=1e-3)

    print("KERNEL_OK")
</pallas_src>

<mosaic_0001>
module attributes {stable_mosaic.version = 11 : i64} {
  func.func @vae_forward_kernel(%arg0: i32, %arg1: memref<16x64xf32, #tpu.memory_space<vmem>>, %arg2: memref<16x20xf32, #tpu.memory_space<vmem>>, %arg3: memref<64x200xbf16, #tpu.memory_space<vmem>>, %arg4: memref<1x200xf32, #tpu.memory_space<vmem>>, %arg5: memref<200x40xbf16, #tpu.memory_space<vmem>>, %arg6: memref<1x40xf32, #tpu.memory_space<vmem>>, %arg7: memref<20x200xbf16, #tpu.memory_space<vmem>>, %arg8: memref<1x200xf32, #tpu.memory_space<vmem>>, %arg9: memref<200x64xbf16, #tpu.memory_space<vmem>>, %arg10: memref<1x64xf32, #tpu.memory_space<vmem>>, %arg11: memref<16x64xf32, #tpu.memory_space<vmem>>, %arg12: memref<16x40xf32, #tpu.memory_space<vmem>>) attributes {dimension_semantics = [#tpu.dimension_semantics<parallel>], iteration_bounds = array<i64: 1>, scalar_prefetch = 0 : i64, scratch_operands = 0 : i64, tpu.core_type = #tpu.core_type<tc>, window_params = [{transform_indices = @transform_0, window_bounds = array<i64: 16, 64>}, {transform_indices = @transform_1, window_bounds = array<i64: 16, 20>}, {pipeline_mode = #tpu.pipeline_mode<synchronous>, transform_indices = @transform_2, window_bounds = array<i64: 64, 200>}, {pipeline_mode = #tpu.pipeline_mode<synchronous>, transform_indices = @transform_3, window_bounds = array<i64: 1, 200>}, {pipeline_mode = #tpu.pipeline_mode<synchronous>, transform_indices = @transform_4, window_bounds = array<i64: 200, 40>}, {pipeline_mode = #tpu.pipeline_mode<synchronous>, transform_indices = @transform_5, window_bounds = array<i64: 1, 40>}, {pipeline_mode = #tpu.pipeline_mode<synchronous>, transform_indices = @transform_6, window_bounds = array<i64: 20, 200>}, {pipeline_mode = #tpu.pipeline_mode<synchronous>, transform_indices = @transform_7, window_bounds = array<i64: 1, 200>}, {pipeline_mode = #tpu.pipeline_mode<synchronous>, transform_indices = @transform_8, window_bounds = array<i64: 200, 64>}, {pipeline_mode = #tpu.pipeline_mode<synchronous>, transform_indices = @transform_9, window_bounds = array<i64: 1, 64>}, {transform_indices = @transform_10, window_bounds = array<i64: 16, 64>}, {transform_indices = @transform_11, window_bounds = array<i64: 16, 40>}]} {
    %c0 = arith.constant 0 : index
    %c0_0 = arith.constant 0 : index
    %0 = vector.load %arg1[%c0, %c0_0] : memref<16x64xf32, #tpu.memory_space<vmem>>, vector<16x64xf32>
    %1 = arith.truncf %0 : vector<16x64xf32> to vector<16x64xbf16>
    %c0_1 = arith.constant 0 : index
    %c0_2 = arith.constant 0 : index
    %2 = vector.load %arg3[%c0_1, %c0_2] : memref<64x200xbf16, #tpu.memory_space<vmem>>, vector<64x200xbf16>
    %cst = arith.constant dense<0.000000e+00> : vector<16x200xf32>
    %3 = tpu.matmul %1, %2, %cst {dimension_numbers = #tpu.dot_dimension_numbers<[1], [0], [0], [1], [0, 0, 1, 1], [], []>} : vector<16x64xbf16>, vector<64x200xbf16>, vector<16x200xf32> -> vector<16x200xf32>
    %c0_3 = arith.constant 0 : index
    %c0_4 = arith.constant 0 : index
    %4 = vector.load %arg4[%c0_3, %c0_4] : memref<1x200xf32, #tpu.memory_space<vmem>>, vector<1x200xf32>
    %5 = vector.broadcast %4 : vector<1x200xf32> to vector<16x200xf32>
    %6 = arith.addf %3, %5 : vector<16x200xf32>
    %cst_5 = arith.constant 0.000000e+00 : f32
    %7 = vector.broadcast %cst_5 : f32 to vector<16x200xf32>
    %8 = arith.maximumf %6, %7 : vector<16x200xf32>
    %9 = arith.truncf %8 : vector<16x200xf32> to vector<16x200xbf16>
    %c0_6 = arith.constant 0 : index
    %c0_7 = arith.constant 0 : index
    %10 = vector.load %arg5[%c0_6, %c0_7] : memref<200x40xbf16, #tpu.memory_space<vmem>>, vector<200x40xbf16>
    %cst_8 = arith.constant dense<0.000000e+00> : vector<16x40xf32>
    %11 = tpu.matmul %9, %10, %cst_8 {dimension_numbers = #tpu.dot_dimension_numbers<[1], [0], [0], [1], [0, 0, 1, 1], [], []>} : vector<16x200xbf16>, vector<200x40xbf16>, vector<16x40xf32> -> vector<16x40xf32>
    %c0_9 = arith.constant 0 : index
    %c0_10 = arith.constant 0 : index
    %12 = vector.load %arg6[%c0_9, %c0_10] : memref<1x40xf32, #tpu.memory_space<vmem>>, vector<1x40xf32>
    %13 = vector.broadcast %12 : vector<1x40xf32> to vector<16x40xf32>
    %14 = arith.addf %11, %13 : vector<16x40xf32>
    %15 = vector.extract_strided_slice %14 {offsets = [0, 0], sizes = [16, 20], strides = [1, 1]} : vector<16x40xf32> to vector<16x20xf32>
    %16 = vector.extract_strided_slice %14 {offsets = [0, 20], sizes = [16, 20], strides = [1, 1]} : vector<16x40xf32> to vector<16x20xf32>
    %c0_11 = arith.constant 0 : index
    %c0_12 = arith.constant 0 : index
    %17 = vector.load %arg2[%c0_11, %c0_12] : memref<16x20xf32, #tpu.memory_space<vmem>>, vector<16x20xf32>
    %18 = arith.mulf %16, %17 : vector<16x20xf32>
    %19 = arith.addf %15, %18 : vector<16x20xf32>
    %20 = arith.truncf %19 : vector<16x20xf32> to vector<16x20xbf16>
    %c0_13 = arith.constant 0 : index
    %c0_14 = arith.constant 0 : index
    %21 = vector.load %arg7[%c0_13, %c0_14] : memref<20x200xbf16, #tpu.memory_space<vmem>>, vector<20x200xbf16>
    %cst_15 = arith.constant dense<0.000000e+00> : vector<16x200xf32>
    %22 = tpu.matmul %20, %21, %cst_15 {dimension_numbers = #tpu.dot_dimension_numbers<[1], [0], [0], [1], [0, 0, 1, 1], [], []>} : vector<16x20xbf16>, vector<20x200xbf16>, vector<16x200xf32> -> vector<16x200xf32>
    %c0_16 = arith.constant 0 : index
    %c0_17 = arith.constant 0 : index
    %23 = vector.load %arg8[%c0_16, %c0_17] : memref<1x200xf32, #tpu.memory_space<vmem>>, vector<1x200xf32>
    %24 = vector.broadcast %23 : vector<1x200xf32> to vector<16x200xf32>
    %25 = arith.addf %22, %24 : vector<16x200xf32>
    %cst_18 = arith.constant 0.000000e+00 : f32
    %26 = vector.broadcast %cst_18 : f32 to vector<16x200xf32>
    %27 = arith.maximumf %25, %26 : vector<16x200xf32>
    %28 = arith.truncf %27 : vector<16x200xf32> to vector<16x200xbf16>
    %c0_19 = arith.constant 0 : index
    %c0_20 = arith.constant 0 : index
    %29 = vector.load %arg9[%c0_19, %c0_20] : memref<200x64xbf16, #tpu.memory_space<vmem>>, vector<200x64xbf16>
    %cst_21 = arith.constant dense<0.000000e+00> : vector<16x64xf32>
    %30 = tpu.matmul %28, %29, %cst_21 {dimension_numbers = #tpu.dot_dimension_numbers<[1], [0], [0], [1], [0, 0, 1, 1], [], []>} : vector<16x200xbf16>, vector<200x64xbf16>, vector<16x64xf32> -> vector<16x64xf32>
    %c0_22 = arith.constant 0 : index
    %c0_23 = arith.constant 0 : index
    %31 = vector.load %arg10[%c0_22, %c0_23] : memref<1x64xf32, #tpu.memory_space<vmem>>, vector<1x64xf32>
    %32 = vector.broadcast %31 : vector<1x64xf32> to vector<16x64xf32>
    %33 = arith.addf %30, %32 : vector<16x64xf32>
    %34 = arith.negf %33 : vector<16x64xf32>
    %35 = math.exp %34 : vector<16x64xf32>
    %cst_24 = arith.constant 1.000000e+00 : f32
    %36 = vector.broadcast %cst_24 : f32 to vector<16x64xf32>
    %37 = arith.addf %36, %35 : vector<16x64xf32>
    %38 = arith.divf %36, %37 : vector<16x64xf32>
    %c0_25 = arith.constant 0 : index
    %c0_26 = arith.constant 0 : index
    %39 = vector.load %arg11[%c0_25, %c0_26] : memref<16x64xf32, #tpu.memory_space<vmem>>, vector<16x64xf32>
    tpu.vector_store %arg11[%c0_25, %c0_26], %38 {strides = array<i32>} : memref<16x64xf32, #tpu.memory_space<vmem>>, vector<16x64xf32>,
    %c0_27 = arith.constant 0 : index
    %c0_28 = arith.constant 0 : index
    %40 = vector.load %arg12[%c0_27, %c0_28] : memref<16x40xf32, #tpu.memory_space<vmem>>, vector<16x40xf32>
    tpu.vector_store %arg12[%c0_27, %c0_28], %14 {strides = array<i32>} : memref<16x40xf32, #tpu.memory_space<vmem>>, vector<16x40xf32>,
    return
  }
  func.func @transform_0(%arg0: i32) -> (i32, i32) {
    %c0_i32 = arith.constant 0 : i32
    %c0_i32_0 = arith.constant 0 : i32
    return %arg0, %c0_i32 : i32, i32
  }
  func.func @transform_1(%arg0: i32) -> (i32, i32) {
    %c0_i32 = arith.constant 0 : i32
    %c0_i32_0 = arith.constant 0 : i32
    return %arg0, %c0_i32 : i32, i32
  }
  func.func @transform_2(%arg0: i32) -> (i32, i32) {
    %c0_i32 = arith.constant 0 : i32
    %c0_i32_0 = arith.constant 0 : i32
    %c0_i32_1 = arith.constant 0 : i32
    return %c0_i32, %c0_i32_0 : i32, i32
  }
  func.func @transform_3(%arg0: i32) -> (i32, i32) {
    %c0_i32 = arith.constant 0 : i32
    %c0_i32_0 = arith.constant 0 : i32
    %c0_i32_1 = arith.constant 0 : i32
    return %c0_i32, %c0_i32_0 : i32, i32
  }
  func.func @transform_4(%arg0: i32) -> (i32, i32) {
    %c0_i32 = arith.constant 0 : i32
    %c0_i32_0 = arith.constant 0 : i32
    %c0_i32_1 = arith.constant 0 : i32
    return %c0_i32, %c0_i32_0 : i32, i32
  }
  func.func @transform_5(%arg0: i32) -> (i32, i32) {
    %c0_i32 = arith.constant 0 : i32
    %c0_i32_0 = arith.constant 0 : i32
    %c0_i32_1 = arith.constant 0 : i32
    return %c0_i32, %c0_i32_0 : i32, i32
  }
  func.func @transform_6(%arg0: i32) -> (i32, i32) {
    %c0_i32 = arith.constant 0 : i32
    %c0_i32_0 = arith.constant 0 : i32
    %c0_i32_1 = arith.constant 0 : i32
    return %c0_i32, %c0_i32_0 : i32, i32
  }
  func.func @transform_7(%arg0: i32) -> (i32, i32) {
    %c0_i32 = arith.constant 0 : i32
    %c0_i32_0 = arith.constant 0 : i32
    %c0_i32_1 = arith.constant 0 : i32
    return %c0_i32, %c0_i32_0 : i32, i32
  }
  func.func @transform_8(%arg0: i32) -> (i32, i32) {
    %c0_i32 = arith.constant 0 : i32
    %c0_i32_0 = arith.constant 0 : i32
    %c0_i32_1 = arith.constant 0 : i32
    return %c0_i32, %c0_i32_0 : i32, i32
  }
  func.func @transform_9(%arg0: i32) -> (i32, i32) {
    %c0_i32 = arith.constant 0 : i32
    %c0_i32_0 = arith.constant 0 : i32
    %c0_i32_1 = arith.constant 0 : i32
    return %c0_i32, %c0_i32_0 : i32, i32
  }
  func.func @transform_10(%arg0: i32) -> (i32, i32) {
    %c0_i32 = arith.constant 0 : i32
    %c0_i32_0 = arith.constant 0 : i32
    return %arg0, %c0_i32 : i32, i32
  }
  func.func @transform_11(%arg0: i32) -> (i32, i32) {
    %c0_i32 = arith.constant 0 : i32
    %c0_i32_0 = arith.constant 0 : i32
    return %arg0, %c0_i32 : i32, i32
  }
}

</mosaic_0001>

<llo_original>
// kernel: tpu_custom_call.1
$region0: #{tpu_custom_call.1}
  #allocation0 [shape = 'u32[]', space=smem, size = 0x4, offset = 0x4, fixed_abs, tag = 'smem constant byte address 0x4 - core index']
  #allocation1 [shape = 'u32[144,128]{1,0:T(1,128)}', space=vmem, size = 0x12000, scoped, tag = 'internal scratch']
  %s0 = inlined_call_operand.vmem [shape: f32[16,64], index: 0, kind: input, shape index: {}]
  %s1 = inlined_call_operand.vmem [shape: f32[16,20], index: 1, kind: input, shape index: {}]
  %s2 = inlined_call_operand.vmem [shape: bf16[64,200], index: 2, kind: input, shape index: {}]
  %s3 = inlined_call_operand.vmem [shape: f32[1,200], index: 3, kind: input, shape index: {}]
  %s4 = inlined_call_operand.vmem [shape: bf16[200,40], index: 4, kind: input, shape index: {}]
  %s5 = inlined_call_operand.vmem [shape: f32[1,40], index: 5, kind: input, shape index: {}]
  %s6 = inlined_call_operand.vmem [shape: bf16[20,200], index: 6, kind: input, shape index: {}]
  %s7 = inlined_call_operand.vmem [shape: f32[1,200], index: 7, kind: input, shape index: {}]
  %s8 = inlined_call_operand.vmem [shape: bf16[200,64], index: 8, kind: input, shape index: {}]
  %s9 = inlined_call_operand.vmem [shape: f32[1,64], index: 9, kind: input, shape index: {}]
  %s10 = inlined_call_operand.hbm [shape: f32[16,64], index: 10, kind: output, shape index: {0}]
  %s11 = inlined_call_operand.hbm [shape: f32[16,40], index: 11, kind: output, shape index: {1}]
  %12 = xla_tuple %s10, %s11
  %s13 = sld [smem:[#allocation0]]
  $region58: #{tpu_custom_call.1} parent=0
    _
  %s15 = ssub.s32 1, %s13
  %s16 = scalar_select 0, %s15, %s13
  $region1: #{tpu_custom_call.1} parent=0
    #allocation2 [shape = 'u8[8192]{0}', space=vmem, size = 0x2000, scoped, tag = 'output window, operand 0, single buffered']
    #allocation3 [shape = 's32[1]{0}', space=sflag, size = 0x4, scoped, tag = 'scoped memory for tpu_custom_call.1']
    #allocation4 [shape = 'u8[8192]{0}', space=vmem, size = 0x2000, scoped, tag = 'output window, operand 1, single buffered']
    #allocation5 [shape = 's32[1]{0}', space=sflag, size = 0x4, scoped, tag = 'scoped memory for tpu_custom_call.1']
    %17 = vsyncpa [#allocation3], 0
    %18 = vsyncpa [#allocation5], 0
    // Predicated region
    $region2: #{tpu_custom_call.1} parent=1 // pred_check
      _
    $region3: #{tpu_custom_call.1} parent=1 // pred_check_branch
      %20 = sbr.rel (0) target = $region5
    $region4: #{tpu_custom_call.1} parent=1 // pred_region
      _
    $region5: #{tpu_custom_call.1} parent=1 // pred_fallthru
      _
    // Predicated region
    $region6: #{tpu_custom_call.1} parent=1 // pred_check
      _
    $region7: #{tpu_custom_call.1} parent=1 // pred_check_branch
      %22 = sbr.rel (0) target = $region9
    $region8: #{tpu_custom_call.1} parent=1 // pred_region
      _
    $region9: #{tpu_custom_call.1} parent=1 // pred_fallthru
      _
    // Predicated region
    $region10: #{tpu_custom_call.1} parent=1 // pred_check
      _
    $region11: #{tpu_custom_call.1} parent=1 // pred_check_branch
      %24 = sbr.rel (0) target = $region13
    $region12: #{tpu_custom_call.1} parent=1 // pred_region
      _
    $region13: #{tpu_custom_call.1} parent=1 // pred_fallthru
      _
    // Predicated region
    $region14: #{tpu_custom_call.1} parent=1 // pred_check
      _
    $region15: #{tpu_custom_call.1} parent=1 // pred_check_branch
      %26 = sbr.rel (0) target = $region17
    $region16: #{tpu_custom_call.1} parent=1 // pred_region
      _
    $region17: #{tpu_custom_call.1} parent=1 // pred_fallthru
      _
    // Predicated region
    $region18: #{tpu_custom_call.1} parent=1 // pred_check
      _
    $region19: #{tpu_custom_call.1} parent=1 // pred_check_branch
      %28 = sbr.rel (0) target = $region21
    $region20: #{tpu_custom_call.1} parent=1 // pred_region
      _
    $region21: #{tpu_custom_call.1} parent=1 // pred_fallthru
      _
    // Predicated region
    $region22: #{tpu_custom_call.1} parent=1 // pred_check
      _
    $region23: #{tpu_custom_call.1} parent=1 // pred_check_branch
      %30 = sbr.rel (0) target = $region25
    $region24: #{tpu_custom_call.1} parent=1 // pred_region
      _
    $region25: #{tpu_custom_call.1} parent=1 // pred_fallthru
      _
    // Predicated region
    $region26: #{tpu_custom_call.1} parent=1 // pred_check
      _
    $region27: #{tpu_custom_call.1} parent=1 // pred_check_branch
      %32 = sbr.rel (0) target = $region29
    $region28: #{tpu_custom_call.1} parent=1 // pred_region
      _
    $region29: #{tpu_custom_call.1} parent=1 // pred_fallthru
      _
    // Predicated region
    $region30: #{tpu_custom_call.1} parent=1 // pred_check
      _
    $region31: #{tpu_custom_call.1} parent=1 // pred_check_branch
      %34 = sbr.rel (0) target = $region33
    $region32: #{tpu_custom_call.1} parent=1 // pred_region
      _
    $region33: #{tpu_custom_call.1} parent=1 // pred_fallthru
      _
    // Predicated region
    $region34: #{tpu_custom_call.1} parent=1 // pred_check
      _
    $region35: #{tpu_custom_call.1} parent=1 // pred_check_branch
      %36 = sbr.rel (0) target = $region37
    $region36: #{tpu_custom_call.1} parent=1 // pred_region
      _
    $region37: #{tpu_custom_call.1} parent=1 // pred_fallthru
      _
    // Predicated region
    $region38: #{tpu_custom_call.1} parent=1 // pred_check
      _
    $region39: #{tpu_custom_call.1} parent=1 // pred_check_branch
      %38 = sbr.rel (0) target = $region41
    $region40: #{tpu_custom_call.1} parent=1 // pred_region
      _
    $region41: #{tpu_custom_call.1} parent=1 // pred_fallthru
      _
    %v40 = vld [vmem:[%s0] sm:$0xff]
    %v41 = vld [vmem:[%s0 + $0x8] sm:$0xff]
    %v42 = vpack.c.bf16 %v41, %v40
    %v43 = vld [vmem:[%s2] sm:$0xff]
    %v44 = vld [vmem:[%s2 + $0x8] sm:$0xff]
    %v45 = vld [vmem:[%s2 + $0x10] sm:$0xff]
    %v46 = vld [vmem:[%s2 + $0x18] sm:$0xff]
    %v47 = vld [vmem:[%s2 + $0x20] sm:$0xff]
    %v48 = vld [vmem:[%s2 + $0x28] sm:$0xff]
    %v49 = vld [vmem:[%s2 + $0x30] sm:$0xff]
    %v50 = vld [vmem:[%s2 + $0x38] sm:$0xff]
    %v51 = vld [vmem:[%s3] sm:$0x3]
    %v53 = vlaneseq
    %v54 = vshrl.u32 %v53, 7
    %v55 = vsub.s32 0, %v54
    %v56 = vrot.slane %v51, %v55
    %v57 = vlaneseq
    %v58 = vshrl.u32 %v57, 7
    %v59 = vsub.s32 1, %v58
    %v60 = vrot.slane %v51, %v59
    %v71 = vunpack.c.l.b16 %v43
    %v72 = vunpack.c.h.b16 %v43
    %v73 = vunpack.c.l.b16 %v44
    %v74 = vunpack.c.h.b16 %v44
    %v75 = vunpack.c.l.b16 %v45
    %v76 = vunpack.c.h.b16 %v45
    %v77 = vunpack.c.l.b16 %v46
    %v78 = vunpack.c.h.b16 %v46
    %v79 = vunpack.c.l.b16 %v47
    %v80 = vunpack.c.h.b16 %v47
    %v81 = vunpack.c.l.b16 %v48
    %v82 = vunpack.c.h.b16 %v48
    %v83 = vunpack.c.l.b16 %v49
    %v84 = vunpack.c.h.b16 %v49
    %v85 = vunpack.c.l.b16 %v50
    %v86 = vunpack.c.h.b16 %v50
    %v87 = vpack.c.b16 %v73, %v71
    %v88 = vpack.c.b16 %v74, %v72
    %v89 = vpack.c.b16 %v77, %v75
    %v90 = vpack.c.b16 %v78, %v76
    %v91 = vpack.c.b16 %v81, %v79
    %v92 = vpack.c.b16 %v82, %v80
    %v93 = vpack.c.b16 %v85, %v83
    %v94 = vpack.c.b16 %v86, %v84
    %vm103 = vcmask 523264
    %v105 = vsel %vm103, %v42, 0
    %107 = vmatprep.subr.bf16.mxu0 %v88
    %108 = vmatpush1.bf16.msra.mxu0 %v87
    %109 = vmatprep.subr.bf16.mxu0 %v90
    %110 = vmatpush1.bf16.msra.mxu0 %v89
    %111 = vmatprep.subr.bf16.mxu0 %v92
    %112 = vmatpush1.bf16.msra.mxu0 %v91
    %113 = vmatprep.subr.bf16.mxu0 %v94
    %114 = vmatpush1.bf16.msra.mxu0 %v93
    %115 = vmatprep.subr.bf16.mxu0 0
    %116 = vmatpush1.bf16.msra.mxu0 0
    %117 = vmatprep.subr.bf16.mxu0 0
    %118 = vmatpush1.bf16.msra.mxu0 0
    %119 = vmatprep.subr.bf16.mxu0 0
    %120 = vmatpush1.bf16.msra.mxu0 0
    %121 = vmatprep.subr.bf16.mxu0 0
    %122 = vmatpush1.bf16.msra.mxu0 0
    %123 = vmatprep.subr.bf16.mxu0 0
    %124 = vmatpush1.bf16.msra.mxu0 0
    %125 = vmatprep.subr.bf16.mxu0 0
    %126 = vmatpush1.bf16.msra.mxu0 0
    %127 = vmatprep.subr.bf16.mxu0 0
    %128 = vmatpush1.bf16.msra.mxu0 0
    %129 = vmatprep.subr.bf16.mxu0 0
    %130 = vmatpush1.bf16.msra.mxu0 0
    %131 = vmatprep.subr.bf16.mxu0 0
    %132 = vmatpush1.bf16.msra.mxu0 0
    %133 = vmatprep.subr.bf16.mxu0 0
    %134 = vmatpush1.bf16.msra.mxu0 0
    %135 = vmatprep.subr.bf16.mxu0 0
    %136 = vmatpush1.bf16.msra.mxu0 0
    %137 = vmatprep.subr.bf16.mxu0 0
    %138 = vmatpush1.bf16.msra.mxu0 0
    %139 = vmatprep.mubr.bf16.mxu0 0
    %140 = vmatmul.mubr.bf16.gmra.mrb[0].mxu0 %v105
    %v141 = vpop.f32.mrb[0].mxu0
    %v142 = vadd.f32 %v56, %v141
    %v143 = vpop.f32.mrb[0].mxu0
    %v144 = vadd.f32 %v60, %v143
    %v145 = vpop.f32.mrb[0].mxu0
    %v146 = vadd.f32 %v56, %v145
    %v147 = vpop.f32.mrb[0].mxu0
    %v148 = vadd.f32 %v60, %v147
    %149 = vdwg.mxu0
    %v150 = vmax.f32 %v142, 0.0
    %v151 = vmax.f32 %v144, 0.0
    %v152 = vmax.f32 %v146, 0.0
    %v153 = vmax.f32 %v148, 0.0
    %v154 = vpack.c.bf16 %v152, %v150
    %v155 = vpack.c.bf16 %v153, %v151
    %v156 = vld [vmem:[%s4] sm:$0xf]
    %v157 = vld [vmem:[%s4 + $0x4] sm:$0xf]
    %v158 = vld [vmem:[%s4 + $0x8] sm:$0xf]
    %v159 = vld [vmem:[%s4 + $0xc] sm:$0xf]
    %v160 = vld [vmem:[%s4 + $0x10] sm:$0xf]
    %v161 = vld [vmem:[%s4 + $0x14] sm:$0xf]
    %v162 = vld [vmem:[%s4 + $0x18] sm:$0xf]
    %v163 = vld [vmem:[%s4 + $0x1c] sm:$0xf]
    %v164 = vld [vmem:[%s4 + $0x20] sm:$0xf]
    %v165 = vld [vmem:[%s4 + $0x24] sm:$0xf]
    %v166 = vld [vmem:[%s4 + $0x28] sm:$0xf]
    %v167 = vld [vmem:[%s4 + $0x2c] sm:$0xf]
    %v168 = vld [vmem:[%s4 + $0x30] sm:$0xf]
    %v169 = vld [vmem:[%s4 + $0x34] sm:$0xf]
    %v170 = vld [vmem:[%s4 + $0x38] sm:$0xf]
    %v171 = vld [vmem:[%s4 + $0x3c] sm:$0xf]
    %v172 = vld [vmem:[%s4 + $0x40] sm:$0xf]
    %v173 = vld [vmem:[%s4 + $0x44] sm:$0xf]
    %v174 = vld [vmem:[%s4 + $0x48] sm:$0xf]
    %v175 = vld [vmem:[%s4 + $0x4c] sm:$0xf]
    %v176 = vld [vmem:[%s4 + $0x50] sm:$0xf]
    %v177 = vld [vmem:[%s4 + $0x54] sm:$0xf]
    %v178 = vld [vmem:[%s4 + $0x58] sm:$0xf]
    %v179 = vld [vmem:[%s4 + $0x5c] sm:$0xf]
    %v180 = vld [vmem:[%s4 + $0x60] sm:$0xf]
    %v181 = vld [vmem:[%s5] sm:$0x1]
    %v183 = vlaneseq
    %v184 = vshrl.u32 %v183, 7
    %v185 = vsub.s32 0, %v184
    %v186 = vrot.slane %v181, %v185
    %v213 = vunpack.c.l.b16 %v156
    %v214 = vunpack.c.l.b16 %v157
    %v215 = vunpack.c.l.b16 %v158
    %v216 = vunpack.c.l.b16 %v159
    %v217 = vunpack.c.l.b16 %v160
    %v218 = vunpack.c.l.b16 %v161
    %v219 = vunpack.c.l.b16 %v162
    %v220 = vunpack.c.l.b16 %v163
    %v221 = vunpack.c.l.b16 %v164
    %v222 = vunpack.c.l.b16 %v165
    %v223 = vunpack.c.l.b16 %v166
    %v224 = vunpack.c.l.b16 %v167
    %v225 = vunpack.c.l.b16 %v168
    %v226 = vunpack.c.l.b16 %v169
    %v227 = vunpack.c.l.b16 %v170
    %v228 = vunpack.c.l.b16 %v171
    %v229 = vunpack.c.l.b16 %v172
    %v230 = vunpack.c.l.b16 %v173
    %v231 = vunpack.c.l.b16 %v174
    %v232 = vunpack.c.l.b16 %v175
    %v233 = vunpack.c.l.b16 %v176
    %v234 = vunpack.c.l.b16 %v177
    %v235 = vunpack.c.l.b16 %v178
    %v236 = vunpack.c.l.b16 %v179
    %v237 = vunpack.c.l.b16 %v180
    %v238 = vpack.c.b16 %v214, %v213
    %v239 = vpack.c.b16 %v216, %v215
    %v240 = vpack.c.b16 %v218, %v217
    %v241 = vpack.c.b16 %v220, %v219
    %v242 = vpack.c.b16 %v222, %v221
    %v243 = vpack.c.b16 %v224, %v223
    %v244 = vpack.c.b16 %v226, %v225
    %v245 = vpack.c.b16 %v228, %v227
    %v246 = vpack.c.b16 %v230, %v229
    %v247 = vpack.c.b16 %v232, %v231
    %v248 = vpack.c.b16 %v234, %v233
    %v249 = vpack.c.b16 %v236, %v235
    %v250 = vpack.c.b16 %v237, %v237
    %vm263 = vcmask 588800
    %v265 = vsel %vm263, %v155, 0
    %vm267 = vcmask 1043456
    %v269 = vsel %vm267, %v250, 0
    %271 = vmatprep.subr.bf16.mxu0 0
    %272 = vmatpush1.bf16.msra.mxu0 %v238
    %273 = vmatprep.subr.bf16.mxu0 0
    %274 = vmatpush1.bf16.msra.mxu0 %v239
    %275 = vmatprep.subr.bf16.mxu0 0
    %276 = vmatpush1.bf16.msra.mxu0 %v240
    %277 = vmatprep.subr.bf16.mxu0 0
    %278 = vmatpush1.bf16.msra.mxu0 %v241
    %279 = vmatprep.subr.bf16.mxu0 0
    %280 = vmatpush1.bf16.msra.mxu0 %v242
    %281 = vmatprep.subr.bf16.mxu0 0
    %282 = vmatpush1.bf16.msra.mxu0 %v243
    %283 = vmatprep.subr.bf16.mxu0 0
    %284 = vmatpush1.bf16.msra.mxu0 %v244
    %285 = vmatprep.subr.bf16.mxu0 0
    %286 = vmatpush1.bf16.msra.mxu0 %v245
    %287 = vmatprep.subr.bf16.mxu0 0
    %288 = vmatpush1.bf16.msra.mxu0 %v246
    %289 = vmatprep.subr.bf16.mxu0 0
    %290 = vmatpush1.bf16.msra.mxu0 %v247
    %291 = vmatprep.subr.bf16.mxu0 0
    %292 = vmatpush1.bf16.msra.mxu0 %v248
    %293 = vmatprep.subr.bf16.mxu0 0
    %294 = vmatpush1.bf16.msra.mxu0 %v249
    %295 = vmatprep.subr.bf16.mxu0 0
    %296 = vmatpush1.bf16.msra.mxu0 %v269
    %297 = vmatprep.subr.bf16.mxu0 0
    %298 = vmatpush1.bf16.msra.mxu0 0
    %299 = vmatprep.subr.bf16.mxu0 0
    %300 = vmatpush1.bf16.msra.mxu0 0
    %301 = vmatprep.subr.bf16.mxu0 0
    %302 = vmatpush1.bf16.msra.mxu0 0
    %303 = vmatprep.mubr.bf16.mxu0 %v265
    %304 = vmatmul.mubr.bf16.gmra.mrb[0].mxu0 %v154
    %v305 = vpop.f32.mrb[0].mxu0
    %v306 = vadd.f32 %v186, %v305
    %v307 = vpop.f32.mrb[0].mxu0
    %v308 = vpop.f32.mrb[0].mxu0
    %v309 = vadd.f32 %v186, %v308
    %v310 = vpop.f32.mrb[0].mxu0
    %311 = vdwg.mxu0
    %v312 = vld [vmem:[%s1] sm:$0xff]
    %v313 = vld [vmem:[%s1 + $0x8] sm:$0xff]
    %316 = vrot.lane.b32.xlu0 %v312, 20
    %v317 = vpop.permute.xlu0 %316
    %318 = vrot.lane.b32.xlu0 %v313, 20
    %v319 = vpop.permute.xlu0 %318
    %v322 = vmul.f32 %v306, %v317
    %v323 = vmul.f32 %v309, %v319
    %326 = vrot.lane.b32.xlu0 %v322, 108
    %v327 = vpop.permute.xlu0 %326
    %328 = vrot.lane.b32.xlu0 %v323, 108
    %v329 = vpop.permute.xlu0 %328
    %v332 = vadd.f32 %v306, %v327
    %v333 = vadd.f32 %v309, %v329
    %v334 = vpack.c.bf16 %v333, %v332
    %v335 = vld [vmem:[%s6] sm:$0xff]
    %v336 = vld [vmem:[%s6 + $0x8] sm:$0xff]
    %v337 = vld [vmem:[%s6 + $0x10] sm:$0x33]
    %v338 = vld [vmem:[%s7] sm:$0x3]
    %v340 = vlaneseq
    %v341 = vshrl.u32 %v340, 7
    %v342 = vsub.s32 0, %v341
    %v343 = vrot.slane %v338, %v342
    %v344 = vlaneseq
    %v345 = vshrl.u32 %v344, 7
    %v346 = vsub.s32 1, %v345
    %v347 = vrot.slane %v338, %v346
    %v353 = vunpack.c.l.b16 %v335
    %v354 = vunpack.c.h.b16 %v335
    %v355 = vunpack.c.l.b16 %v336
    %v356 = vunpack.c.h.b16 %v336
    %v357 = vunpack.c.l.b16 %v337
    %v358 = vunpack.c.h.b16 %v337
    %v359 = vpack.c.b16 %v355, %v353
    %v360 = vpack.c.b16 %v356, %v354
    %v361 = vpack.c.b16 %v357, %v357
    %v362 = vpack.c.b16 %v358, %v358
    %vm365 = vcmask 162816
    %v367 = vsel %vm365, %v334, 0
    %vm369 = vcmask 1041408
    %v371 = vsel %vm369, %v361, 0
    %v374 = vsel %vm369, %v362, 0
    %376 = vmatprep.subr.bf16.mxu0 %v360
    %377 = vmatpush1.bf16.msra.mxu0 %v359
    %378 = vmatprep.subr.bf16.mxu0 %v374
    %379 = vmatpush1.bf16.msra.mxu0 %v371
    %380 = vmatprep.subr.bf16.mxu0 0
    %381 = vmatpush1.bf16.msra.mxu0 0
    %382 = vmatprep.subr.bf16.mxu0 0
    %383 = vmatpush1.bf16.msra.mxu0 0
    %384 = vmatprep.subr.bf16.mxu0 0
    %385 = vmatpush1.bf16.msra.mxu0 0
    %386 = vmatprep.subr.bf16.mxu0 0
    %387 = vmatpush1.bf16.msra.mxu0 0
    %388 = vmatprep.subr.bf16.mxu0 0
    %389 = vmatpush1.bf16.msra.mxu0 0
    %390 = vmatprep.subr.bf16.mxu0 0
    %391 = vmatpush1.bf16.msra.mxu0 0
    %392 = vmatprep.subr.bf16.mxu0 0
    %393 = vmatpush1.bf16.msra.mxu0 0
    %394 = vmatprep.subr.bf16.mxu0 0
    %395 = vmatpush1.bf16.msra.mxu0 0
    %396 = vmatprep.subr.bf16.mxu0 0
    %397 = vmatpush1.bf16.msra.mxu0 0
    %398 = vmatprep.subr.bf16.mxu0 0
    %399 = vmatpush1.bf16.msra.mxu0 0
    %400 = vmatprep.subr.bf16.mxu0 0
    %401 = vmatpush1.bf16.msra.mxu0 0
    %402 = vmatprep.subr.bf16.mxu0 0
    %403 = vmatpush1.bf16.msra.mxu0 0
    %404 = vmatprep.subr.bf16.mxu0 0
    %405 = vmatpush1.bf16.msra.mxu0 0
    %406 = vmatprep.subr.bf16.mxu0 0
    %407 = vmatpush1.bf16.msra.mxu0 0
    %408 = vmatprep.mubr.bf16.mxu0 0
    %409 = vmatmul.mubr.bf16.gmra.mrb[0].mxu0 %v367
    %v410 = vpop.f32.mrb[0].mxu0
    %v411 = vadd.f32 %v343, %v410
    %v412 = vpop.f32.mrb[0].mxu0
    %v413 = vadd.f32 %v347, %v412
    %v414 = vpop.f32.mrb[0].mxu0
    %v415 = vadd.f32 %v343, %v414
    %v416 = vpop.f32.mrb[0].mxu0
    %v417 = vadd.f32 %v347, %v416
    %418 = vdwg.mxu0
    %v419 = vmax.f32 %v411, 0.0
    %v420 = vmax.f32 %v413, 0.0
    %v421 = vmax.f32 %v415, 0.0
    %v422 = vmax.f32 %v417, 0.0
    %v423 = vpack.c.bf16 %v421, %v419
    %v424 = vpack.c.bf16 %v422, %v420
    %v425 = vld [vmem:[%s8] sm:$0xf]
    %v426 = vld [vmem:[%s8 + $0x4] sm:$0xf]
    %v427 = vld [vmem:[%s8 + $0x8] sm:$0xf]
    %v428 = vld [vmem:[%s8 + $0xc] sm:$0xf]
    %v429 = vld [vmem:[%s8 + $0x10] sm:$0xf]
    %v430 = vld [vmem:[%s8 + $0x14] sm:$0xf]
    %v431 = vld [vmem:[%s8 + $0x18] sm:$0xf]
    %v432 = vld [vmem:[%s8 + $0x1c] sm:$0xf]
    %v433 = vld [vmem:[%s8 + $0x20] sm:$0xf]
    %v434 = vld [vmem:[%s8 + $0x24] sm:$0xf]
    %v435 = vld [vmem:[%s8 + $0x28] sm:$0xf]
    %v436 = vld [vmem:[%s8 + $0x2c] sm:$0xf]
    %v437 = vld [vmem:[%s8 + $0x30] sm:$0xf]
    %v438 = vld [vmem:[%s8 + $0x34] sm:$0xf]
    %v439 = vld [vmem:[%s8 + $0x38] sm:$0xf]
    %v440 = vld [vmem:[%s8 + $0x3c] sm:$0xf]
    %v441 = vld [vmem:[%s8 + $0x40] sm:$0xf]
    %v442 = vld [vmem:[%s8 + $0x44] sm:$0xf]
    %v443 = vld [vmem:[%s8 + $0x48] sm:$0xf]
    %v444 = vld [vmem:[%s8 + $0x4c] sm:$0xf]
    %v445 = vld [vmem:[%s8 + $0x50] sm:$0xf]
    %v446 = vld [vmem:[%s8 + $0x54] sm:$0xf]
    %v447 = vld [vmem:[%s8 + $0x58] sm:$0xf]
    %v448 = vld [vmem:[%s8 + $0x5c] sm:$0xf]
    %v449 = vld [vmem:[%s8 + $0x60] sm:$0xf]
    %v450 = vld [vmem:[%s9] sm:$0x1]
    %v452 = vlaneseq
    %v453 = vshrl.u32 %v452, 7
    %v454 = vsub.s32 0, %v453
    %v455 = vrot.slane %v450, %v454
    %v482 = vunpack.c.l.b16 %v425
    %v483 = vunpack.c.l.b16 %v426
    %v484 = vunpack.c.l.b16 %v427
    %v485 = vunpack.c.l.b16 %v428
    %v486 = vunpack.c.l.b16 %v429
    %v487 = vunpack.c.l.b16 %v430
    %v488 = vunpack.c.l.b16 %v431
    %v489 = vunpack.c.l.b16 %v432
    %v490 = vunpack.c.l.b16 %v433
    %v491 = vunpack.c.l.b16 %v434
    %v492 = vunpack.c.l.b16 %v435
    %v493 = vunpack.c.l.b16 %v436
    %v494 = vunpack.c.l.b16 %v437
    %v495 = vunpack.c.l.b16 %v438
    %v496 = vunpack.c.l.b16 %v439
    %v497 = vunpack.c.l.b16 %v440
    %v498 = vunpack.c.l.b16 %v441
    %v499 = vunpack.c.l.b16 %v442
    %v500 = vunpack.c.l.b16 %v443
    %v501 = vunpack.c.l.b16 %v444
    %v502 = vunpack.c.l.b16 %v445
    %v503 = vunpack.c.l.b16 %v446
    %v504 = vunpack.c.l.b16 %v447
    %v505 = vunpack.c.l.b16 %v448
    %v506 = vunpack.c.l.b16 %v449
    %v507 = vpack.c.b16 %v483, %v482
    %v508 = vpack.c.b16 %v485, %v484
    %v509 = vpack.c.b16 %v487, %v486
    %v510 = vpack.c.b16 %v489, %v488
    %v511 = vpack.c.b16 %v491, %v490
    %v512 = vpack.c.b16 %v493, %v492
    %v513 = vpack.c.b16 %v495, %v494
    %v514 = vpack.c.b16 %v497, %v496
    %v515 = vpack.c.b16 %v499, %v498
    %v516 = vpack.c.b16 %v501, %v500
    %v517 = vpack.c.b16 %v503, %v502
    %v518 = vpack.c.b16 %v505, %v504
    %v519 = vpack.c.b16 %v506, %v506
    %v533 = vsel %vm263, %v424, 0
    %v536 = vsel %vm267, %v519, 0
    %538 = vmatprep.subr.bf16.mxu0 0
    %539 = vmatpush1.bf16.msra.mxu0 %v507
    %540 = vmatprep.subr.bf16.mxu0 0
    %541 = vmatpush1.bf16.msra.mxu0 %v508
    %542 = vmatprep.subr.bf16.mxu0 0
    %543 = vmatpush1.bf16.msra.mxu0 %v509
    %544 = vmatprep.subr.bf16.mxu0 0
    %545 = vmatpush1.bf16.msra.mxu0 %v510
    %546 = vmatprep.subr.bf16.mxu0 0
    %547 = vmatpush1.bf16.msra.mxu0 %v511
    %548 = vmatprep.subr.bf16.mxu0 0
    %549 = vmatpush1.bf16.msra.mxu0 %v512
    %550 = vmatprep.subr.bf16.mxu0 0
    %551 = vmatpush1.bf16.msra.mxu0 %v513
    %552 = vmatprep.subr.bf16.mxu0 0
    %553 = vmatpush1.bf16.msra.mxu0 %v514
    %554 = vmatprep.subr.bf16.mxu0 0
    %555 = vmatpush1.bf16.msra.mxu0 %v515
    %556 = vmatprep.subr.bf16.mxu0 0
    %557 = vmatpush1.bf16.msra.mxu0 %v516
    %558 = vmatprep.subr.bf16.mxu0 0
    %559 = vmatpush1.bf16.msra.mxu0 %v517
    %560 = vmatprep.subr.bf16.mxu0 0
    %561 = vmatpush1.bf16.msra.mxu0 %v518
    %562 = vmatprep.subr.bf16.mxu0 0
    %563 = vmatpush1.bf16.msra.mxu0 %v536
    %564 = vmatprep.subr.bf16.mxu0 0
    %565 = vmatpush1.bf16.msra.mxu0 0
    %566 = vmatprep.subr.bf16.mxu0 0
    %567 = vmatpush1.bf16.msra.mxu0 0
    %568 = vmatprep.subr.bf16.mxu0 0
    %569 = vmatpush1.bf16.msra.mxu0 0
    %570 = vmatprep.mubr.bf16.mxu0 %v533
    %571 = vmatmul.mubr.bf16.gmra.mrb[0].mxu0 %v423
    %v572 = vpop.f32.mrb[0].mxu0
    %v573 = vadd.f32 %v455, %v572
    %v574 = vpop.f32.mrb[0].mxu0
    %v575 = vpop.f32.mrb[0].mxu0
    %v576 = vadd.f32 %v455, %v575
    %v577 = vpop.f32.mrb[0].mxu0
    %578 = vdwg.mxu0
    %v579 = vxor.u32 %v573, 2147483648
    %v580 = vxor.u32 %v576, 2147483648
    %v581 = vmul.f32 %v579, 1.442695
    %v582 = vpow.pop %v581
    %v583 = vmul.f32 %v580, 1.442695
    %v584 = vpow.pop %v583
    %v585 = vadd.f32 %v582, 1.0
    %v586 = vadd.f32 %v584, 1.0
    %v587 = vrcp.pop %v585
    %v588 = vmul.f32 1.0, %v587
    %v589 = vrcp.pop %v586
    %v590 = vmul.f32 1.0, %v589
    %591 = vst.msk [vmem:[#allocation2] sm:$0xff] %vm103, %v588
    %592 = vst.msk [vmem:[#allocation2 + $0x8] sm:$0xff] %vm103, %v590
    %vm593 = vcmask 326656
    %594 = vst.msk [vmem:[#allocation4] sm:$0xff] %vm593, %v306
    %595 = vst.msk [vmem:[#allocation4 + $0x8] sm:$0xff] %vm593, %v309
    // Predicated region
    $region42: #{tpu_custom_call.1} parent=1 // pred_check
      _
    $region43: #{tpu_custom_call.1} parent=1 // pred_check_branch
      %597 = sbr.rel (0) target = $region45
    $region44: #{tpu_custom_call.1} parent=1 // pred_region
      %s599 = ssub.s32 256, 256
      %600 = vsyncadd [#allocation3], %s599
      %s601 = sshll.u32 [#allocation2], 4
      %s602 = int_to_ptr.vmem [resolvable:$true] %s601
      %607 = dma.vmem_to_hbm [thread:$0]  %s602, 256, %s10, [#allocation3], 128, 128, 8
    $region45: #{tpu_custom_call.1} parent=1 // pred_fallthru
      _
    // Predicated region
    $region46: #{tpu_custom_call.1} parent=1 // pred_check
      _
    $region47: #{tpu_custom_call.1} parent=1 // pred_check_branch
      %609 = sbr.rel (0) target = $region49
    $region48: #{tpu_custom_call.1} parent=1 // pred_region
      %s611 = ssub.s32 256, 256
      %612 = vsyncadd [#allocation5], %s611
      %s613 = sshll.u32 [#allocation4], 4
      %s614 = int_to_ptr.vmem [resolvable:$true] %s613
      %619 = dma.vmem_to_hbm [thread:$0]  %s614, 256, %s11, [#allocation5], 128, 128, 8
    $region49: #{tpu_custom_call.1} parent=1 // pred_fallthru
      _
    // Predicated region
    $region50: #{tpu_custom_call.1} parent=1 // pred_check
      _
    $region51: #{tpu_custom_call.1} parent=1 // pred_check_branch
      %621 = sbr.rel (0) target = $region53
    $region52: #{tpu_custom_call.1} parent=1 // pred_region
      %622 = dma.done [#allocation3], 256
    $region53: #{tpu_custom_call.1} parent=1 // pred_fallthru
      _
    // Predicated region
    $region54: #{tpu_custom_call.1} parent=1 // pred_check
      _
    $region55: #{tpu_custom_call.1} parent=1 // pred_check_branch
      %624 = sbr.rel (0) target = $region57
    $region56: #{tpu_custom_call.1} parent=1 // pred_region
      %625 = dma.done [#allocation5], 256
    $region57: #{tpu_custom_call.1} parent=1 // pred_fallthru
      _
    %626 = vsyncpa [#allocation3], 1
    %627 = vsyncpa [#allocation5], 1

</llo_original>
